<compile_context>
chip_gen: v7x
topology: tpu7x:2x2x1
jax: 0.10.0
libtpu: 0.0.40
codegen_flags: <defaults>
</compile_context>

<pallas_src>
import jax
import jax.numpy as jnp
from jax.experimental import pallas as pl
from jax.experimental.pallas import tpu as pltpu


F_PAD = 8                      # per-type xi feature width, padded (max real F is 7)
NUM_TYPES = 5
XI_WIDTH = NUM_TYPES * F_PAD   # 40: type-segmented xi operand width
TYPE_IDS = {"Start": 0, "Pick": 1, "Delivery": 2, "Depot": 3, "Destination": 4}
F_BY_TYPE = {"Start": 4, "Pick": 7, "Delivery": 2, "Depot": 1, "Destination": 0}


# ----------------------------------------------------------------------------
# Kernel
# ----------------------------------------------------------------------------
def struct2vec_kernel(slab_ref, xi_ref, w_lane_ref, lower_ref, w_all_ref, out_ref):
    # Packed neighbor/edge slab: one full-width VPU multiply, one max (relu on
    # the edge 3P lanes only; -inf lower bound keeps the mu lanes unchanged),
    # one cross-sublane reduction.
    slab = jnp.maximum(slab_ref[...] * w_lane_ref[...], lower_ref[...])
    z = jnp.sum(slab, axis=1)                                   # (TB, 4P)

    # Fuse theta1/theta2/theta4/theta6 and all five theta8 blocks into ONE
    # MXU matmul: zx = [z | type-segmented xi], K = 4P + 5*F_PAD.
    zx = jnp.concatenate([z, xi_ref[...]], axis=-1)             # (TB, 4P + 40)
    acc = jnp.dot(zx, w_all_ref[...], preferred_element_type=jnp.float32)

    # Output columns are zero-padded to a lane-dense width -> unmasked stores.
    out_ref[...] = jnp.maximum(acc, 0.0)                        # (TB, P_OUT)


# ----------------------------------------------------------------------------
# Parameters
# ----------------------------------------------------------------------------
def make_params(p_dim, key):
    """Deterministic weights with PyTorch nn.Linear-style uniform init
    (stored in the original (out_features, in_features) layout)."""
    names_shapes = [
        ("theta1", (p_dim, p_dim)),
        ("theta2", (p_dim, p_dim)),
        ("theta3", (p_dim, 1)),
        ("theta4", (p_dim, p_dim)),
        ("theta5", (p_dim, 1)),
        ("theta6", (p_dim, p_dim)),
        ("theta7", (p_dim, 1)),
        ("theta8_Start", (p_dim, 4)),
        ("theta8_Pick", (p_dim, 7)),
        ("theta8_Delivery", (p_dim, 2)),
        ("theta8_Depot", (p_dim, 1)),
        ("theta8_Destination", (p_dim, 1)),
    ]
    keys = jax.random.split(key, len(names_shapes))
    params = {}
    for k, (name, (out_f, in_f)) in zip(keys, names_shapes):
        bound = 1.0 / (in_f ** 0.5)
        params[name] = jax.random.uniform(
            k, (out_f, in_f), jnp.float32, -bound, bound)
    return params


def prepare_params(params):
    """One-time prep: transpose, fuse, stack and pad weights into kernel layout."""
    p = params["theta1"].shape[0]
    p_out = ((p + 127) // 128) * 128            # lane-dense output width

    # Per-lane multipliers for the packed slab [mu | wi | ui | ti].
    w_lane = jnp.concatenate([
        jnp.ones((p,), jnp.float32),
        params["theta3"].T.reshape(p).astype(jnp.float32),
        params["theta5"].T.reshape(p).astype(jnp.float32),
        params["theta7"].T.reshape(p).astype(jnp.float32),
    ]).reshape(1, 1, 4 * p)

    # relu lower bound: -inf on the mu lanes (identity), 0 on the edge lanes.
    lower = jnp.concatenate([
        jnp.full((p,), -jnp.inf, jnp.float32),
        jnp.zeros((3 * p,), jnp.float32),
    ]).reshape(1, 1, 4 * p)

    # Fused weight: rows = [theta1; theta2; theta4; theta6; theta8_* x 5],
    # columns zero-padded to p_out for lane-dense stores.
    def pad_rows(w_t):
        out = jnp.zeros((F_PAD, p), jnp.float32)
        return out.at[: w_t.shape[0]].set(w_t)

    blocks = [params["theta1"].T, params["theta2"].T,
              params["theta4"].T, params["theta6"].T]
    for name in ("Start", "Pick", "Delivery", "Depot"):
        blocks.append(pad_rows(params[f"theta8_{name}"].T.astype(jnp.float32)))
    blocks.append(jnp.zeros((F_PAD, p), jnp.float32))   # 'Destination': no xi term
    w_all = jnp.concatenate(blocks, axis=0).astype(jnp.float32)   # (4p + 40, p)
    w_all = jnp.pad(w_all, ((0, 0), (0, p_out - p)))               # (4p + 40, p_out)

    return {"w_lane": w_lane, "lower": lower, "w_all": w_all}


# ----------------------------------------------------------------------------
# Wrappers
# ----------------------------------------------------------------------------
@jax.jit
def struct2vec_forward_batched(prepped, type_ids, xi_pad, mu_N, wi, ui, ti):
    """B nodes of arbitrary (possibly mixed) types in ONE pallas_call.

    type_ids: (B,) int in [0, 5)  (see TYPE_IDS)
    xi_pad:   (B, F_PAD) node features zero-padded to F_PAD (ignored for type 4)
    mu_N:     (B, N, P); wi/ui/ti: (B, N)
    Returns (B, P).
    """
    w_lane, lower, w_all = prepped["w_lane"], prepped["lower"], prepped["w_all"]
    k_all, p_out = w_all.shape
    four_p = w_lane.shape[-1]
    p = four_p // 4

    mu_N = jnp.asarray(mu_N, jnp.float32)
    B, N, _ = mu_N.shape
    wi = jnp.asarray(wi, jnp.float32).reshape(B, N, 1)
    ui = jnp.asarray(ui, jnp.float32).reshape(B, N, 1)
    ti = jnp.asarray(ti, jnp.float32).reshape(B, N, 1)

    # One contiguous lane-packed operand [mu_N | wi | ui | ti]  -> (B, N, 4P).
    slab = jnp.concatenate([
        mu_N,
        jnp.broadcast_to(wi, (B, N, p)),
        jnp.broadcast_to(ui, (B, N, p)),
        jnp.broadcast_to(ti, (B, N, p)),
    ], axis=-1)

    # Type-segmented xi: node b's features land in segment type_ids[b].  Since
    # theta8 for every type is stacked inside w_all, mixed-type batches need
    # no dispatch and no per-type pallas_call.
    xi_pad = jnp.asarray(xi_pad, jnp.float32).reshape(B, F_PAD)
    type_ids = jnp.asarray(type_ids, jnp.int32)
    onehot = jax.nn.one_hot(type_ids, NUM_TYPES, dtype=jnp.float32)      # (B, 5)
    xi_seg = (onehot[:, :, None] * xi_pad[:, None, :]).reshape(B, XI_WIDTH)

    # Pad the batch to a multiple of the node-block size (sublane-aligned).
    tb = 128 if B >= 128 else ((B + 7) // 8) * 8
    bp = ((B + tb - 1) // tb) * tb
    if bp != B:
        slab = jnp.pad(slab, ((0, bp - B), (0, 0), (0, 0)))
        xi_seg = jnp.pad(xi_seg, ((0, bp - B), (0, 0)))

    flops = 2 * bp * k_all * p_out + 3 * bp * N * four_p
    bytes_accessed = 4 * (slab.size + xi_seg.size + w_lane.size
                          + lower.size + w_all.size + bp * p_out)

    out = pl.pallas_call(
        struct2vec_kernel,
        out_shape=jax.ShapeDtypeStruct((bp, p_out), jnp.float32),
        grid=(bp // tb,),
        in_specs=[
            pl.BlockSpec((tb, N, four_p), lambda i: (i, 0, 0)),   # node block
            pl.BlockSpec((tb, XI_WIDTH), lambda i: (i, 0)),       # node block
            pl.BlockSpec((1, 1, four_p), lambda i: (0, 0, 0)),    # resident weight
            pl.BlockSpec((1, 1, four_p), lambda i: (0, 0, 0)),    # resident weight
            pl.BlockSpec((k_all, p_out), lambda i: (0, 0)),       # resident weight
        ],
        out_specs=pl.BlockSpec((tb, p_out), lambda i: (i, 0)),
        compiler_params=pltpu.CompilerParams(
            dimension_semantics=("parallel",)),
        cost_estimate=pl.CostEstimate(
            flops=flops, transcendentals=0, bytes_accessed=bytes_accessed),
    )(slab, xi_seg, w_lane, lower, w_all)

    return out[:B, :p]


def struct2vec_forward(prepped, name, xi, mu_N, wi, ui, ti):
    """Mirrors struct2vec_model.forward for one node.  Returns mu of shape (P,)."""
    mu_N = jnp.asarray(mu_N, jnp.float32)[None]                   # (1, N, P)
    wi = jnp.asarray(wi, jnp.float32).reshape(1, -1)
    ui = jnp.asarray(ui, jnp.float32).reshape(1, -1)
    ti = jnp.asarray(ti, jnp.float32).reshape(1, -1)
    tid = TYPE_IDS.get(name, TYPE_IDS["Destination"])
    if name in ("Start", "Pick", "Delivery", "Depot"):
        xi = jnp.asarray(xi, jnp.float32).reshape(1, -1)
    else:
        xi = jnp.zeros((1, 1), jnp.float32)
    xi_pad = jnp.pad(xi, ((0, 0), (0, F_PAD - xi.shape[1])))
    type_ids = jnp.full((1,), tid, jnp.int32)
    out = struct2vec_forward_batched(prepped, type_ids, xi_pad, mu_N, wi, ui, ti)
    return out[0]


# ----------------------------------------------------------------------------
# Plain-JAX reference (replicates the PyTorch semantics)
# ----------------------------------------------------------------------------
def reference_forward(params, name, xi, mu_N, wi, ui, ti):
    relu = lambda x: jnp.maximum(x, 0.0)
    lin = lambda w, x: x @ w.T
    tmp = (lin(params["theta1"], jnp.sum(mu_N, 0))
           + lin(params["theta2"], jnp.sum(relu(lin(params["theta3"],
                                                    wi.reshape(-1, 1))), 0))
           + lin(params["theta4"], jnp.sum(relu(lin(params["theta5"],
                                                    ui.reshape(-1, 1))), 0))
           + lin(params["theta6"], jnp.sum(relu(lin(params["theta7"],
                                                    ti.reshape(-1, 1))), 0)))
    if name == "Start":
        return relu(tmp + lin(params["theta8_Start"], xi))
    elif name == "Pick":
        return relu(tmp + lin(params["theta8_Pick"], xi))
    elif name == "Delivery":
        return relu(tmp + lin(params["theta8_Delivery"], xi))
    elif name == "Depot":
        return relu(tmp + lin(params["theta8_Depot"], xi))
    else:
        return relu(tmp)


# ----------------------------------------------------------------------------
# Demo / checks
# ----------------------------------------------------------------------------
if __name__ == "__main__":
    p_dim = 32   # embedding width
    n_nbr = 8    # neighbors per node

    key = jax.random.PRNGKey(0)
    kp, k1, k2, k3 = jax.random.split(key, 4)

    params = make_params(p_dim, kp)
    prepped = prepare_params(params)   # one-time weight prep

    # ---- single node, 'Start' ----
    kmu, kw, ku, kt, kxi = jax.random.split(k1, 5)
    mu_N = jax.random.normal(kmu, (n_nbr, p_dim), jnp.float32)
    wi = jax.random.normal(kw, (n_nbr,), jnp.float32)
    ui = jax.random.normal(ku, (n_nbr,), jnp.float32)
    ti = jax.random.normal(kt, (n_nbr,), jnp.float32)
    xi = jax.random.normal(kxi, (4,), jnp.float32)      # 'Start' has 4 features

    mu = jax.block_until_ready(
        struct2vec_forward(prepped, "Start", xi, mu_N, wi, ui, ti))
    ref = reference_forward(params, "Start", xi, mu_N, wi, ui, ti)
    assert mu.shape == (p_dim,)
    assert jnp.allclose(mu, ref, atol=1e-4, rtol=1e-4)

    # ---- single node, 'Destination' (no xi term) ----
    mu_dst = jax.block_until_ready(
        struct2vec_forward(prepped, "Destination", xi, mu_N, wi, ui, ti))
    ref_dst = reference_forward(params, "Destination", xi, mu_N, wi, ui, ti)
    assert jnp.allclose(mu_dst, ref_dst, atol=1e-4, rtol=1e-4)

    # ---- mixed-type batch (15 nodes, all 5 types) in ONE pallas_call ----
    B_mix = 15
    names = ["Start", "Pick", "Delivery", "Depot", "Destination"]
    ka, kb, kc, kd, ke = jax.random.split(k2, 5)
    mu_N_m = jax.random.normal(ka, (B_mix, n_nbr, p_dim), jnp.float32)
    wi_m = jax.random.normal(kb, (B_mix, n_nbr), jnp.float32)
    ui_m = jax.random.normal(kc, (B_mix, n_nbr), jnp.float32)
    ti_m = jax.random.normal(kd, (B_mix, n_nbr), jnp.float32)
    xi_raw = jax.random.normal(ke, (B_mix, F_PAD), jnp.float32)

    type_names = [names[b % len(names)] for b in range(B_mix)]
    type_ids_m = jnp.array([TYPE_IDS[n] for n in type_names], jnp.int32)
    feat_mask = jnp.array(
        [[1.0 if f < F_BY_TYPE[n] else 0.0 for f in range(F_PAD)]
         for n in type_names], jnp.float32)
    xi_pad_m = xi_raw * feat_mask                      # zero-padded per node type

    mu_mix = jax.block_until_ready(struct2vec_forward_batched(
        prepped, type_ids_m, xi_pad_m, mu_N_m, wi_m, ui_m, ti_m))
    assert mu_mix.shape == (B_mix, p_dim)
    for b in range(B_mix):
        nm = type_names[b]
        f = max(F_BY_TYPE[nm], 1)
        ref_b = reference_forward(params, nm, xi_pad_m[b, :f], mu_N_m[b],
                                  wi_m[b], ui_m[b], ti_m[b])
        assert jnp.allclose(mu_mix[b], ref_b, atol=1e-4, rtol=1e-4), nm

    # ---- large single-type batch (exercises grid > 1, "parallel" axis) ----
    B_big = 256
    kf, kg, kh, ki, kj = jax.random.split(k3, 5)
    mu_N_b = jax.random.normal(kf, (B_big, n_nbr, p_dim), jnp.float32)
    wi_b = jax.random.normal(kg, (B_big, n_nbr), jnp.float32)
    ui_b = jax.random.normal(kh, (B_big, n_nbr), jnp.float32)
    ti_b = jax.random.normal(ki, (B_big, n_nbr), jnp.float32)
    xi_b = jax.random.normal(kj, (B_big, 7), jnp.float32)      # 'Pick' has 7
    xi_b_pad = jnp.pad(xi_b, ((0, 0), (0, F_PAD - 7)))
    type_ids_b = jnp.full((B_big,), TYPE_IDS["Pick"], jnp.int32)

    mu_big = jax.block_until_ready(struct2vec_forward_batched(
        prepped, type_ids_b, xi_b_pad, mu_N_b, wi_b, ui_b, ti_b))
    assert mu_big.shape == (B_big, p_dim)
    ref_big = jax.vmap(lambda x, m, w, u, t: reference_forward(
        params, "Pick", x, m, w, u, t))(xi_b, mu_N_b, wi_b, ui_b, ti_b)
    assert jnp.allclose(mu_big, ref_big, atol=1e-4, rtol=1e-4)

    print("KERNEL_OK")
</pallas_src>

<mosaic_0001>
module attributes {stable_mosaic.version = 11 : i64} {
  func.func @struct2vec_kernel(%arg0: i32, %arg1: memref<8x8x128xf32, #tpu.memory_space<vmem>>, %arg2: memref<8x40xf32, #tpu.memory_space<vmem>>, %arg3: memref<1x1x128xf32, #tpu.memory_space<vmem>>, %arg4: memref<1x1x128xf32, #tpu.memory_space<vmem>>, %arg5: memref<168x128xf32, #tpu.memory_space<vmem>>, %arg6: memref<8x128xf32, #tpu.memory_space<vmem>>) attributes {dimension_semantics = [#tpu.dimension_semantics<parallel>], iteration_bounds = array<i64: 1>, scalar_prefetch = 0 : i64, scratch_operands = 0 : i64, tpu.core_type = #tpu.core_type<tc>, window_params = [{transform_indices = @transform_0, window_bounds = array<i64: 8, 8, 128>}, {transform_indices = @transform_1, window_bounds = array<i64: 8, 40>}, {pipeline_mode = #tpu.pipeline_mode<synchronous>, transform_indices = @transform_2, window_bounds = array<i64: 1, 1, 128>}, {pipeline_mode = #tpu.pipeline_mode<synchronous>, transform_indices = @transform_3, window_bounds = array<i64: 1, 1, 128>}, {pipeline_mode = #tpu.pipeline_mode<synchronous>, transform_indices = @transform_4, window_bounds = array<i64: 168, 128>}, {transform_indices = @transform_5, window_bounds = array<i64: 8, 128>}]} {
    %c0 = arith.constant 0 : index
    %c0_0 = arith.constant 0 : index
    %c0_1 = arith.constant 0 : index
    %0 = vector.load %arg1[%c0, %c0_0, %c0_1] : memref<8x8x128xf32, #tpu.memory_space<vmem>>, vector<8x8x128xf32>
    %c0_2 = arith.constant 0 : index
    %c0_3 = arith.constant 0 : index
    %c0_4 = arith.constant 0 : index
    %1 = vector.load %arg3[%c0_2, %c0_3, %c0_4] : memref<1x1x128xf32, #tpu.memory_space<vmem>>, vector<1x1x128xf32>
    %2 = vector.broadcast %1 : vector<1x1x128xf32> to vector<8x8x128xf32>
    %3 = arith.mulf %0, %2 : vector<8x8x128xf32>
    %c0_5 = arith.constant 0 : index
    %c0_6 = arith.constant 0 : index
    %c0_7 = arith.constant 0 : index
    %4 = vector.load %arg4[%c0_5, %c0_6, %c0_7] : memref<1x1x128xf32, #tpu.memory_space<vmem>>, vector<1x1x128xf32>
    %5 = vector.broadcast %4 : vector<1x1x128xf32> to vector<8x8x128xf32>
    %6 = arith.maximumf %3, %5 : vector<8x8x128xf32>
    %cst = arith.constant dense<0.000000e+00> : vector<8x128xf32>
    %7 = vector.multi_reduction <add>, %6, %cst [1] : vector<8x8x128xf32> to vector<8x128xf32>
    %c0_8 = arith.constant 0 : index
    %c0_9 = arith.constant 0 : index
    %8 = vector.load %arg2[%c0_8, %c0_9] : memref<8x40xf32, #tpu.memory_space<vmem>>, vector<8x40xf32>
    %9 = tpu.concatenate %7, %8 in 1 : vector<8x128xf32>, vector<8x40xf32> -> vector<8x168xf32>
    %c0_10 = arith.constant 0 : index
    %c0_11 = arith.constant 0 : index
    %10 = vector.load %arg5[%c0_10, %c0_11] : memref<168x128xf32, #tpu.memory_space<vmem>>, vector<168x128xf32>
    %cst_12 = arith.constant dense<0.000000e+00> : vector<8x128xf32>
    %11 = tpu.matmul %9, %10, %cst_12 {dimension_numbers = #tpu.dot_dimension_numbers<[1], [0], [0], [1], [0, 0, 1, 1], [], []>} : vector<8x168xf32>, vector<168x128xf32>, vector<8x128xf32> -> vector<8x128xf32>
    %cst_13 = arith.constant 0.000000e+00 : f32
    %12 = vector.broadcast %cst_13 : f32 to vector<8x128xf32>
    %13 = arith.maximumf %11, %12 : vector<8x128xf32>
    %c0_14 = arith.constant 0 : index
    %c0_15 = arith.constant 0 : index
    %14 = vector.load %arg6[%c0_14, %c0_15] : memref<8x128xf32, #tpu.memory_space<vmem>>, vector<8x128xf32>
    tpu.vector_store %arg6[%c0_14, %c0_15], %13 {strides = array<i32>} : memref<8x128xf32, #tpu.memory_space<vmem>>, vector<8x128xf32>,
    return
  }
  func.func @transform_0(%arg0: i32) -> (i32, i32, i32) {
    %c0_i32 = arith.constant 0 : i32
    %c0_i32_0 = arith.constant 0 : i32
    %c0_i32_1 = arith.constant 0 : i32
    return %arg0, %c0_i32, %c0_i32_0 : i32, i32, i32
  }
  func.func @transform_1(%arg0: i32) -> (i32, i32) {
    %c0_i32 = arith.constant 0 : i32
    %c0_i32_0 = arith.constant 0 : i32
    return %arg0, %c0_i32 : i32, i32
  }
  func.func @transform_2(%arg0: i32) -> (i32, i32, i32) {
    %c0_i32 = arith.constant 0 : i32
    %c0_i32_0 = arith.constant 0 : i32
    %c0_i32_1 = arith.constant 0 : i32
    %c0_i32_2 = arith.constant 0 : i32
    return %c0_i32, %c0_i32_0, %c0_i32_1 : i32, i32, i32
  }
  func.func @transform_3(%arg0: i32) -> (i32, i32, i32) {
    %c0_i32 = arith.constant 0 : i32
    %c0_i32_0 = arith.constant 0 : i32
    %c0_i32_1 = arith.constant 0 : i32
    %c0_i32_2 = arith.constant 0 : i32
    return %c0_i32, %c0_i32_0, %c0_i32_1 : i32, i32, i32
  }
  func.func @transform_4(%arg0: i32) -> (i32, i32) {
    %c0_i32 = arith.constant 0 : i32
    %c0_i32_0 = arith.constant 0 : i32
    %c0_i32_1 = arith.constant 0 : i32
    return %c0_i32, %c0_i32_0 : i32, i32
  }
  func.func @transform_5(%arg0: i32) -> (i32, i32) {
    %c0_i32 = arith.constant 0 : i32
    %c0_i32_0 = arith.constant 0 : i32
    return %arg0, %c0_i32 : i32, i32
  }
}

</mosaic_0001>

<llo_original>
// kernel: mul.15
$region0: #{mul.15}
  #allocation0 [shape = 's32[1]{0}', space=sflag, size = 0x4, scoped, tag = 'scoped memory for mul.15']
  %s0 = inlined_call_operand.vmem [shape: f32[1,40], index: 0, kind: input, shape index: {}]
  %s1 = inlined_call_operand.vmem [shape: f32[1,40], index: 1, kind: input, shape index: {}]
  %s2 = inlined_call_operand.vmem [shape: f32[1,40], index: 2, kind: output, shape index: {}]
  %v3 = vld [vmem:[%s0] sm:$0x1]
  %v4 = vld [vmem:[%s1] sm:$0x1]
  %5 = xla_tuple %v3, %v4
  %6 = xla_tuple %5
  %v7 = vmul.f32 %v3, %v4
  %8 = xla_tuple %v7
  %9 = vst [vmem:[%s2] sm:$0x1] %v7

// kernel: struct2vec_forward_batched.1
$region0: #{struct2vec_forward_batched.1}
  #allocation0 [shape = 'u32[]', space=smem, size = 0x4, offset = 0x4, fixed_abs, tag = 'smem constant byte address 0x4 - core index']
  #allocation1 [shape = 'u32[144,128]{1,0:T(1,128)}', space=vmem, size = 0x12000, scoped, tag = 'internal scratch']
  %s0 = inlined_call_operand.vmem [shape: f32[8,8,128], index: 0, kind: input, shape index: {}]
  %s1 = inlined_call_operand.vmem [shape: f32[8,40], index: 1, kind: input, shape index: {}]
  %s2 = inlined_call_operand.vmem [shape: f32[1,1,128], index: 2, kind: input, shape index: {}]
  %s3 = inlined_call_operand.vmem [shape: f32[1,1,128], index: 3, kind: input, shape index: {}]
  %s4 = inlined_call_operand.vmem [shape: f32[168,128], index: 4, kind: input, shape index: {}]
  %s5 = inlined_call_operand.vmem [shape: f32[8,128], index: 5, kind: output, shape index: {}]
  %s6 = sld [smem:[#allocation0]]
  $region30: #{struct2vec_forward_batched.1} parent=0
    _
  %s8 = ssub.s32 1, %s6
  %s9 = scalar_select 0, %s8, %s6
  // Predicated region
  $region2: #{struct2vec_forward_batched.1} parent=0 // pred_check
    _
  $region3: #{struct2vec_forward_batched.1} parent=0 // pred_check_branch
    %11 = sbr.rel (0) target = $region5
  $region4: #{struct2vec_forward_batched.1} parent=0 // pred_region
    _
  $region5: #{struct2vec_forward_batched.1} parent=0 // pred_fallthru
    _
  // Predicated region
  $region6: #{struct2vec_forward_batched.1} parent=0 // pred_check
    _
  $region7: #{struct2vec_forward_batched.1} parent=0 // pred_check_branch
    %13 = sbr.rel (0) target = $region9
  $region8: #{struct2vec_forward_batched.1} parent=0 // pred_region
    _
  $region9: #{struct2vec_forward_batched.1} parent=0 // pred_fallthru
    _
  // Predicated region
  $region10: #{struct2vec_forward_batched.1} parent=0 // pred_check
    _
  $region11: #{struct2vec_forward_batched.1} parent=0 // pred_check_branch
    %15 = sbr.rel (0) target = $region13
  $region12: #{struct2vec_forward_batched.1} parent=0 // pred_region
    _
  $region13: #{struct2vec_forward_batched.1} parent=0 // pred_fallthru
    _
  // Predicated region
  $region14: #{struct2vec_forward_batched.1} parent=0 // pred_check
    _
  $region15: #{struct2vec_forward_batched.1} parent=0 // pred_check_branch
    %17 = sbr.rel (0) target = $region17
  $region16: #{struct2vec_forward_batched.1} parent=0 // pred_region
    _
  $region17: #{struct2vec_forward_batched.1} parent=0 // pred_fallthru
    _
  // Predicated region
  $region18: #{struct2vec_forward_batched.1} parent=0 // pred_check
    _
  $region19: #{struct2vec_forward_batched.1} parent=0 // pred_check_branch
    %19 = sbr.rel (0) target = $region21
  $region20: #{struct2vec_forward_batched.1} parent=0 // pred_region
    _
  $region21: #{struct2vec_forward_batched.1} parent=0 // pred_fallthru
    _
  %v20 = vld [vmem:[%s0] sm:$0xff]
  %v21 = vld [vmem:[%s0 + $0x8] sm:$0xff]
  %v22 = vld [vmem:[%s0 + $0x10] sm:$0xff]
  %v23 = vld [vmem:[%s0 + $0x18] sm:$0xff]
  %v24 = vld [vmem:[%s0 + $0x20] sm:$0xff]
  %v25 = vld [vmem:[%s0 + $0x28] sm:$0xff]
  %v26 = vld [vmem:[%s0 + $0x30] sm:$0xff]
  %v27 = vld [vmem:[%s0 + $0x38] sm:$0xff]
  %v28 = vld [vmem:[%s2] sm:$0x1]
  %v30 = vlaneseq
  %v31 = vshrl.u32 %v30, 7
  %v32 = vsub.s32 0, %v31
  %v33 = vrot.slane %v28, %v32
  %v35 = vmul.f32 %v20, %v33
  %v36 = vmul.f32 %v21, %v33
  %v37 = vmul.f32 %v22, %v33
  %v38 = vmul.f32 %v23, %v33
  %v39 = vmul.f32 %v24, %v33
  %v40 = vmul.f32 %v25, %v33
  %v41 = vmul.f32 %v26, %v33
  %v42 = vmul.f32 %v27, %v33
  %v43 = vld [vmem:[%s3] sm:$0x1]
  %v45 = vlaneseq
  %v46 = vshrl.u32 %v45, 7
  %v47 = vsub.s32 0, %v46
  %v48 = vrot.slane %v43, %v47
  %v50 = vmax.f32 %v35, %v48
  %v51 = vmax.f32 %v36, %v48
  %v52 = vmax.f32 %v37, %v48
  %v53 = vmax.f32 %v38, %v48
  %v54 = vmax.f32 %v39, %v48
  %v55 = vmax.f32 %v40, %v48
  %v56 = vmax.f32 %v41, %v48
  %v57 = vmax.f32 %v42, %v48
  %v58 = vrot.slane %v50, 4
  %v59 = vadd.f32 %v50, %v58
  %v60 = vrot.slane %v59, 2
  %v61 = vadd.f32 %v59, %v60
  %v62 = vrot.slane %v61, 1
  %v63 = vadd.f32 %v61, %v62
  %v64 = vrot.slane %v51, 4
  %v65 = vadd.f32 %v51, %v64
  %v66 = vrot.slane %v65, 2
  %v67 = vadd.f32 %v65, %v66
  %v68 = vrot.slane %v67, 1
  %v69 = vadd.f32 %v67, %v68
  %v70 = vrot.slane %v52, 4
  %v71 = vadd.f32 %v52, %v70
  %v72 = vrot.slane %v71, 2
  %v73 = vadd.f32 %v71, %v72
  %v74 = vrot.slane %v73, 1
  %v75 = vadd.f32 %v73, %v74
  %v76 = vrot.slane %v53, 4
  %v77 = vadd.f32 %v53, %v76
  %v78 = vrot.slane %v77, 2
  %v79 = vadd.f32 %v77, %v78
  %v80 = vrot.slane %v79, 1
  %v81 = vadd.f32 %v79, %v80
  %v82 = vrot.slane %v54, 4
  %v83 = vadd.f32 %v54, %v82
  %v84 = vrot.slane %v83, 2
  %v85 = vadd.f32 %v83, %v84
  %v86 = vrot.slane %v85, 1
  %v87 = vadd.f32 %v85, %v86
  %v88 = vrot.slane %v55, 4
  %v89 = vadd.f32 %v55, %v88
  %v90 = vrot.slane %v89, 2
  %v91 = vadd.f32 %v89, %v90
  %v92 = vrot.slane %v91, 1
  %v93 = vadd.f32 %v91, %v92
  %v94 = vrot.slane %v56, 4
  %v95 = vadd.f32 %v56, %v94
  %v96 = vrot.slane %v95, 2
  %v97 = vadd.f32 %v95, %v96
  %v98 = vrot.slane %v97, 1
  %v99 = vadd.f32 %v97, %v98
  %v100 = vrot.slane %v57, 4
  %v101 = vadd.f32 %v57, %v100
  %v102 = vrot.slane %v101, 2
  %v103 = vadd.f32 %v101, %v102
  %v104 = vrot.slane %v103, 1
  %v105 = vadd.f32 %v103, %v104
  %v106 = vld [vmem:[%s1] sm:$0xff]
  %vm115 = vcmask 1041409
  %v116 = vsel %vm115, %v69, %v63
  %vm117 = vcmask 1042434
  %v118 = vsel %vm117, %v75, %v116
  %vm119 = vcmask 1043459
  %v120 = vsel %vm119, %v81, %v118
  %vm121 = vcmask 1044484
  %v122 = vsel %vm121, %v87, %v120
  %vm123 = vcmask 1045509
  %v124 = vsel %vm123, %v93, %v122
  %vm125 = vcmask 1046534
  %v126 = vsel %vm125, %v99, %v124
  %vm127 = vcmask 1047559
  %v128 = vsel %vm127, %v105, %v126
  %v130 = vld [vmem:[%s4] sm:$0xff]
  %v131 = vld [vmem:[%s4 + $0x8] sm:$0xff]
  %v132 = vld [vmem:[%s4 + $0x10] sm:$0xff]
  %v133 = vld [vmem:[%s4 + $0x18] sm:$0xff]
  %v134 = vld [vmem:[%s4 + $0x20] sm:$0xff]
  %v135 = vld [vmem:[%s4 + $0x28] sm:$0xff]
  %v136 = vld [vmem:[%s4 + $0x30] sm:$0xff]
  %v137 = vld [vmem:[%s4 + $0x38] sm:$0xff]
  %v138 = vld [vmem:[%s4 + $0x40] sm:$0xff]
  %v139 = vld [vmem:[%s4 + $0x48] sm:$0xff]
  %v140 = vld [vmem:[%s4 + $0x50] sm:$0xff]
  %v141 = vld [vmem:[%s4 + $0x58] sm:$0xff]
  %v142 = vld [vmem:[%s4 + $0x60] sm:$0xff]
  %v143 = vld [vmem:[%s4 + $0x68] sm:$0xff]
  %v144 = vld [vmem:[%s4 + $0x70] sm:$0xff]
  %v145 = vld [vmem:[%s4 + $0x78] sm:$0xff]
  %v146 = vld [vmem:[%s4 + $0x80] sm:$0xff]
  %v147 = vld [vmem:[%s4 + $0x88] sm:$0xff]
  %v148 = vld [vmem:[%s4 + $0x90] sm:$0xff]
  %v149 = vld [vmem:[%s4 + $0x98] sm:$0xff]
  %v150 = vld [vmem:[%s4 + $0xa0] sm:$0xff]
  %vm151 = vcmask 326656
  %v153 = vsel %vm151, %v106, 0
  %155 = vmatprep.subr.mxu0 0.0
  %156 = vmatpush1.msra.mxu0 %v130
  %157 = vmatprep.subr.mxu0 0.0
  %158 = vmatpush1.msra.mxu0 %v131
  %159 = vmatprep.subr.mxu0 0.0
  %160 = vmatpush1.msra.mxu0 %v132
  %161 = vmatprep.subr.mxu0 0.0
  %162 = vmatpush1.msra.mxu0 %v133
  %163 = vmatprep.subr.mxu0 0.0
  %164 = vmatpush1.msra.mxu0 %v134
  %165 = vmatprep.subr.mxu0 0.0
  %166 = vmatpush1.msra.mxu0 %v135
  %167 = vmatprep.subr.mxu0 0.0
  %168 = vmatpush1.msra.mxu0 %v136
  %169 = vmatprep.subr.mxu0 0.0
  %170 = vmatpush1.msra.mxu0 %v137
  %171 = vmatprep.subr.mxu0 0.0
  %172 = vmatpush1.msra.mxu0 %v138
  %173 = vmatprep.subr.mxu0 0.0
  %174 = vmatpush1.msra.mxu0 %v139
  %175 = vmatprep.subr.mxu0 0.0
  %176 = vmatpush1.msra.mxu0 %v140
  %177 = vmatprep.subr.mxu0 0.0
  %178 = vmatpush1.msra.mxu0 %v141
  %179 = vmatprep.subr.mxu0 0.0
  %180 = vmatpush1.msra.mxu0 %v142
  %181 = vmatprep.subr.mxu0 0.0
  %182 = vmatpush1.msra.mxu0 %v143
  %183 = vmatprep.subr.mxu0 0.0
  %184 = vmatpush1.msra.mxu0 %v144
  %185 = vmatprep.subr.mxu0 0.0
  %186 = vmatpush1.msra.mxu0 %v145
  %187 = vmatprep.subr.mxu0 0.0
  %188 = vmatpush1.msra.mxu0 %v146
  %189 = vmatprep.subr.mxu0 0.0
  %190 = vmatpush1.msra.mxu0 %v147
  %191 = vmatprep.subr.mxu0 0.0
  %192 = vmatpush1.msra.mxu0 %v148
  %193 = vmatprep.subr.mxu0 0.0
  %194 = vmatpush1.msra.mxu0 %v149
  %195 = vmatprep.subr.mxu0 0.0
  %196 = vmatpush1.msra.mxu0 %v150
  %197 = vmatprep.subr.mxu0 0.0
  %198 = vmatpush1.msra.mxu0 0.0
  %199 = vmatprep.subr.mxu0 0.0
  %200 = vmatpush1.msra.mxu0 0.0
  %201 = vmatprep.subr.mxu0 0.0
  %202 = vmatpush1.msra.mxu0 0.0
  %203 = vmatprep.subr.mxu0 0.0
  %204 = vmatpush1.msra.mxu0 0.0
  %205 = vmatprep.subr.mxu0 0.0
  %206 = vmatpush1.msra.mxu0 0.0
  %207 = vmatprep.subr.mxu0 0.0
  %208 = vmatpush1.msra.mxu0 0.0
  %209 = vmatprep.subr.mxu0 0.0
  %210 = vmatpush1.msra.mxu0 0.0
  %211 = vmatprep.subr.mxu0 0.0
  %212 = vmatpush1.msra.mxu0 0.0
  %213 = vmatprep.subr.mxu0 0.0
  %214 = vmatpush1.msra.mxu0 0.0
  %215 = vmatprep.subr.mxu0 0.0
  %216 = vmatpush1.msra.mxu0 0.0
  %217 = vmatprep.subr.mxu0 0.0
  %218 = vmatpush1.msra.mxu0 0.0
  %219 = vmatprep.mubr.f32.mxu0 %v153
  %220 = vmatmul.mubr.f32.gmra.mrb[0].mxu0 %v128
  %v221 = vpop.f32.mrb[0].mxu0
  %v222 = vadd.f32 0.0, %v221
  %v223 = vpop.f32.mrb[0].mxu0
  %224 = vdwg.mxu0
  %v225 = vmax.f32 %v222, 0.0
  %226 = vst [vmem:[%s5] sm:$0xff] %v225
  // Predicated region
  $region22: #{struct2vec_forward_batched.1} parent=0 // pred_check
    _
  $region23: #{struct2vec_forward_batched.1} parent=0 // pred_check_branch
    %228 = sbr.rel (0) target = $region25
  $region24: #{struct2vec_forward_batched.1} parent=0 // pred_region
    _
  $region25: #{struct2vec_forward_batched.1} parent=0 // pred_fallthru
    _
  // Predicated region
  $region26: #{struct2vec_forward_batched.1} parent=0 // pred_check
    _
  $region27: #{struct2vec_forward_batched.1} parent=0 // pred_check_branch
    %230 = sbr.rel (0) target = $region29
  $region28: #{struct2vec_forward_batched.1} parent=0 // pred_region
    _
  $region29: #{struct2vec_forward_batched.1} parent=0 // pred_fallthru
    _

</llo_original>
